<compile_context>
chip_gen: v7x
topology: tpu7x:2x2x1
jax: 0.10.0
libtpu: 0.0.40
codegen_flags: <defaults>
</compile_context>

<pallas_src>
import jax
import jax.numpy as jnp
from jax import lax
from jax.experimental import pallas as pl
from jax.experimental.pallas import tpu as pltpu

BN_EPS = 1e-5
LANE = 128  # TPU lane width; input/output feature dims padded to multiples.


def _pad_lanes(n):
    return pl.cdiv(n, LANE) * LANE


def _bn_relu_fused(h, gamma, beta):
    """Training-mode BatchNorm1d folded into per-feature scale/shift, then ReLU.

    Statistics are over the full batch (axis 0) of `h`, exactly as
    nn.BatchNorm1d does in training mode (biased variance, eps=1e-5).
    """
    mean = jnp.mean(h, axis=0, keepdims=True)                      # (1, N)
    diff = h - mean
    var = jnp.mean(diff * diff, axis=0, keepdims=True)             # biased
    scale = gamma * lax.rsqrt(var + BN_EPS)                        # (1, N)
    shift = beta - mean * scale                                    # (1, N)
    return jnp.maximum(h * scale + shift, 0.0)


def small_network_kernel(
    x_ref,
    w1_ref, g1_ref, be1_ref,
    w2_ref, g2_ref, be2_ref,
    w3_ref, g3_ref, be3_ref,
    w4_ref, b4_ref,
    o_ref,
):
    x = x_ref[...]  # (B, in_pad), f32, lane-dense

    # Layer 1: Linear(in, 128) + BN + ReLU   (bias dropped: cancels under BN)
    h = jnp.dot(x, w1_ref[...], preferred_element_type=jnp.float32)
    h = _bn_relu_fused(h, g1_ref[...], be1_ref[...])

    # Layer 2: Linear(128, 64) + BN + ReLU
    h = jnp.dot(h, w2_ref[...], preferred_element_type=jnp.float32)
    h = _bn_relu_fused(h, g2_ref[...], be2_ref[...])

    # Layer 3: Linear(64, 32) + BN + ReLU
    h = jnp.dot(h, w3_ref[...], preferred_element_type=jnp.float32)
    h = _bn_relu_fused(h, g3_ref[...], be3_ref[...])

    # Layer 4: Linear(32, out_pad) -- columns beyond out_dim are zero padding,
    # giving a lane-dense (unmasked) output store.
    out = jnp.dot(h, w4_ref[...], preferred_element_type=jnp.float32) + b4_ref[...]
    o_ref[...] = out.astype(o_ref.dtype)


def small_network_forward(x, params):
    """Forward pass of SmallNetwork.

    x: (B, in_dim)      -> (B, out_dim)        (one BatchNorm batch), or
       (G, B, in_dim)   -> (G, B, out_dim)     (G independent BatchNorm batches;
                                                each group keeps its own full-batch
                                                BN statistics, i.e. one module call
                                                per group, pipelined over a grid).
    """
    squeeze = x.ndim == 2
    if squeeze:
        x = x[None]
    G, B, in_dim = x.shape
    out_dim = params["w4"].shape[1]
    in_pad = _pad_lanes(in_dim)
    out_pad = _pad_lanes(out_dim)

    # Lane-dense input: pad features with zeros and pad w1's contraction rows
    # to match (zero rows contribute nothing to the matmul).
    xp = x if in_pad == in_dim else jnp.pad(x, ((0, 0), (0, 0), (0, in_pad - in_dim)))
    w1p = params["w1"]
    if in_pad != in_dim:
        w1p = jnp.pad(w1p, ((0, in_pad - in_dim), (0, 0)))

    # Lane-dense output: pad the last layer's output columns; the wrapper
    # slices the padding off afterwards.
    w4p = jnp.pad(params["w4"], ((0, 0), (0, out_pad - out_dim)))
    b4p = jnp.pad(params["b4"], ((0, 0), (0, out_pad - out_dim)))

    args = (
        xp,
        w1p, params["g1"], params["be1"],
        params["w2"], params["g2"], params["be2"],
        params["w3"], params["g3"], params["be3"],
        w4p, b4p,
    )

    def const_spec(a):
        # Whole array as a single block, same block index for every grid step
        # -> fetched into VMEM once and kept resident across the whole grid.
        return pl.BlockSpec(a.shape, lambda g: (0,) * a.ndim)

    in_specs = [pl.BlockSpec((None, B, in_pad), lambda g: (g, 0, 0))]
    in_specs += [const_spec(a) for a in args[1:]]
    out_specs = pl.BlockSpec((None, B, out_pad), lambda g: (g, 0, 0))

    out = pl.pallas_call(
        small_network_kernel,
        out_shape=jax.ShapeDtypeStruct((G, B, out_pad), jnp.float32),
        grid=(G,),
        in_specs=in_specs,
        out_specs=out_specs,
        compiler_params=pltpu.CompilerParams(
            dimension_semantics=("parallel",),  # v7x: split groups across TCs
        ),
    )(*args)

    out = out[..., :out_dim]
    return out[0] if squeeze else out


def init_params(key, in_dim, out_dim):
    """Deterministic synthetic parameters (PyTorch-style uniform fan-in init).

    Linear weights are stored as (in_features, out_features) = W_pytorch.T.
    b1/b2/b3 are still created (checkpoint-compatible layout) even though the
    kernel skips them -- they cancel exactly under training-mode BatchNorm.
    All per-feature vectors are (1, N) so they broadcast along the lane axis.
    """
    dims = [in_dim, 128, 64, 32, out_dim]
    params = {}
    keys = jax.random.split(key, 16)
    ki = 0
    for li in range(4):
        fan_in, fan_out = dims[li], dims[li + 1]
        bound = 1.0 / jnp.sqrt(jnp.float32(fan_in))
        params[f"w{li + 1}"] = jax.random.uniform(
            keys[ki], (fan_in, fan_out), jnp.float32, -bound, bound); ki += 1
        params[f"b{li + 1}"] = jax.random.uniform(
            keys[ki], (1, fan_out), jnp.float32, -bound, bound); ki += 1
        if li < 3:  # BatchNorm after the first three linears
            params[f"g{li + 1}"] = 1.0 + 0.1 * jax.random.normal(
                keys[ki], (1, fan_out), jnp.float32); ki += 1
            params[f"be{li + 1}"] = 0.1 * jax.random.normal(
                keys[ki], (1, fan_out), jnp.float32); ki += 1
    return params


def _bn_relu_ref(h, gamma, beta):
    mean = jnp.mean(h, axis=0, keepdims=True)
    var = jnp.mean((h - mean) * (h - mean), axis=0, keepdims=True)
    return jnp.maximum((h - mean) * lax.rsqrt(var + BN_EPS) * gamma + beta, 0.0)


def reference_forward(x, params):
    """Pure-JAX reference with the FULL PyTorch semantics (including b1-b3)."""
    h = x @ params["w1"] + params["b1"]
    h = _bn_relu_ref(h, params["g1"], params["be1"])
    h = h @ params["w2"] + params["b2"]
    h = _bn_relu_ref(h, params["g2"], params["be2"])
    h = h @ params["w3"] + params["b3"]
    h = _bn_relu_ref(h, params["g3"], params["be3"])
    return h @ params["w4"] + params["b4"]


if __name__ == "__main__":
    key = jax.random.PRNGKey(0)
    k_x, k_xg, k_p = jax.random.split(key, 3)

    in_dim, out_dim = 16, 8
    params = init_params(k_p, in_dim, out_dim)

    # Case 1: a single BatchNorm batch, exactly one module call.
    B = 8
    x = jax.random.normal(k_x, (B, in_dim), jnp.float32)
    out = jax.block_until_ready(small_network_forward(x, params))
    ref = reference_forward(x, params)
    assert out.shape == (B, out_dim)
    assert jnp.allclose(out, ref, atol=1e-4, rtol=1e-4), "mismatch vs reference"

    # Case 2: several independent evaluations fused into one pipelined,
    # parallel-grid pallas_call (each group keeps its own full-batch BN stats).
    G = 4
    xg = jax.random.normal(k_xg, (G, B, in_dim), jnp.float32)
    outg = jax.block_until_ready(small_network_forward(xg, params))
    refg = jax.vmap(lambda xx: reference_forward(xx, params))(xg)
    assert outg.shape == (G, B, out_dim)
    assert jnp.allclose(outg, refg, atol=1e-4, rtol=1e-4), "grouped mismatch"

    print("KERNEL_OK")
</pallas_src>

<mosaic_0001>
module attributes {stable_mosaic.version = 11 : i64} {
  func.func @small_network_kernel(%arg0: i32, %arg1: memref<1x8x128xf32, #tpu.memory_space<vmem>>, %arg2: memref<128x128xf32, #tpu.memory_space<vmem>>, %arg3: memref<1x128xf32, #tpu.memory_space<vmem>>, %arg4: memref<1x128xf32, #tpu.memory_space<vmem>>, %arg5: memref<128x64xf32, #tpu.memory_space<vmem>>, %arg6: memref<1x64xf32, #tpu.memory_space<vmem>>, %arg7: memref<1x64xf32, #tpu.memory_space<vmem>>, %arg8: memref<64x32xf32, #tpu.memory_space<vmem>>, %arg9: memref<1x32xf32, #tpu.memory_space<vmem>>, %arg10: memref<1x32xf32, #tpu.memory_space<vmem>>, %arg11: memref<32x128xf32, #tpu.memory_space<vmem>>, %arg12: memref<1x128xf32, #tpu.memory_space<vmem>>, %arg13: memref<1x8x128xf32, #tpu.memory_space<vmem>>) attributes {dimension_semantics = [#tpu.dimension_semantics<parallel>], iteration_bounds = array<i64: 1>, scalar_prefetch = 0 : i64, scratch_operands = 0 : i64, tpu.core_type = #tpu.core_type<tc>, window_params = [{transform_indices = @transform_0, window_bounds = array<i64: 1, 8, 128>}, {pipeline_mode = #tpu.pipeline_mode<synchronous>, transform_indices = @transform_1, window_bounds = array<i64: 128, 128>}, {pipeline_mode = #tpu.pipeline_mode<synchronous>, transform_indices = @transform_2, window_bounds = array<i64: 1, 128>}, {pipeline_mode = #tpu.pipeline_mode<synchronous>, transform_indices = @transform_3, window_bounds = array<i64: 1, 128>}, {pipeline_mode = #tpu.pipeline_mode<synchronous>, transform_indices = @transform_4, window_bounds = array<i64: 128, 64>}, {pipeline_mode = #tpu.pipeline_mode<synchronous>, transform_indices = @transform_5, window_bounds = array<i64: 1, 64>}, {pipeline_mode = #tpu.pipeline_mode<synchronous>, transform_indices = @transform_6, window_bounds = array<i64: 1, 64>}, {pipeline_mode = #tpu.pipeline_mode<synchronous>, transform_indices = @transform_7, window_bounds = array<i64: 64, 32>}, {pipeline_mode = #tpu.pipeline_mode<synchronous>, transform_indices = @transform_8, window_bounds = array<i64: 1, 32>}, {pipeline_mode = #tpu.pipeline_mode<synchronous>, transform_indices = @transform_9, window_bounds = array<i64: 1, 32>}, {pipeline_mode = #tpu.pipeline_mode<synchronous>, transform_indices = @transform_10, window_bounds = array<i64: 32, 128>}, {pipeline_mode = #tpu.pipeline_mode<synchronous>, transform_indices = @transform_11, window_bounds = array<i64: 1, 128>}, {transform_indices = @transform_12, window_bounds = array<i64: 1, 8, 128>}]} {
    %c0 = arith.constant 0 : index
    %c0_0 = arith.constant 0 : index
    %c0_1 = arith.constant 0 : index
    %0 = vector.load %arg1[%c0, %c0_0, %c0_1] : memref<1x8x128xf32, #tpu.memory_space<vmem>>, vector<1x8x128xf32>
    %1 = vector.shape_cast %0 : vector<1x8x128xf32> to vector<8x128xf32>
    %c0_2 = arith.constant 0 : index
    %c0_3 = arith.constant 0 : index
    %2 = vector.load %arg2[%c0_2, %c0_3] : memref<128x128xf32, #tpu.memory_space<vmem>>, vector<128x128xf32>
    %cst = arith.constant dense<0.000000e+00> : vector<8x128xf32>
    %3 = tpu.matmul %1, %2, %cst {dimension_numbers = #tpu.dot_dimension_numbers<[1], [0], [0], [1], [0, 0, 1, 1], [], []>} : vector<8x128xf32>, vector<128x128xf32>, vector<8x128xf32> -> vector<8x128xf32>
    %c0_4 = arith.constant 0 : index
    %c0_5 = arith.constant 0 : index
    %4 = vector.load %arg3[%c0_4, %c0_5] : memref<1x128xf32, #tpu.memory_space<vmem>>, vector<1x128xf32>
    %c0_6 = arith.constant 0 : index
    %c0_7 = arith.constant 0 : index
    %5 = vector.load %arg4[%c0_6, %c0_7] : memref<1x128xf32, #tpu.memory_space<vmem>>, vector<1x128xf32>
    %cst_8 = arith.constant dense<0.000000e+00> : vector<128xf32>
    %6 = vector.multi_reduction <add>, %3, %cst_8 [0] : vector<8x128xf32> to vector<128xf32>
    %7 = vector.shape_cast %6 : vector<128xf32> to vector<1x128xf32>
    %cst_9 = arith.constant 8.000000e+00 : f32
    %8 = vector.broadcast %cst_9 : f32 to vector<1x128xf32>
    %9 = arith.divf %7, %8 : vector<1x128xf32>
    %10 = vector.broadcast %9 : vector<1x128xf32> to vector<8x128xf32>
    %11 = arith.subf %3, %10 : vector<8x128xf32>
    %12 = arith.mulf %11, %11 : vector<8x128xf32>
    %cst_10 = arith.constant dense<0.000000e+00> : vector<128xf32>
    %13 = vector.multi_reduction <add>, %12, %cst_10 [0] : vector<8x128xf32> to vector<128xf32>
    %14 = vector.shape_cast %13 : vector<128xf32> to vector<1x128xf32>
    %cst_11 = arith.constant 8.000000e+00 : f32
    %15 = vector.broadcast %cst_11 : f32 to vector<1x128xf32>
    %16 = arith.divf %14, %15 : vector<1x128xf32>
    %cst_12 = arith.constant 9.99999974E-6 : f32
    %17 = vector.broadcast %cst_12 : f32 to vector<1x128xf32>
    %18 = arith.addf %16, %17 : vector<1x128xf32>
    %19 = math.rsqrt %18 : vector<1x128xf32>
    %20 = arith.mulf %4, %19 : vector<1x128xf32>
    %21 = arith.mulf %9, %20 : vector<1x128xf32>
    %22 = arith.subf %5, %21 : vector<1x128xf32>
    %23 = vector.broadcast %20 : vector<1x128xf32> to vector<8x128xf32>
    %24 = arith.mulf %3, %23 : vector<8x128xf32>
    %25 = vector.broadcast %22 : vector<1x128xf32> to vector<8x128xf32>
    %26 = arith.addf %24, %25 : vector<8x128xf32>
    %cst_13 = arith.constant 0.000000e+00 : f32
    %27 = vector.broadcast %cst_13 : f32 to vector<8x128xf32>
    %28 = arith.maximumf %26, %27 : vector<8x128xf32>
    %c0_14 = arith.constant 0 : index
    %c0_15 = arith.constant 0 : index
    %29 = vector.load %arg5[%c0_14, %c0_15] : memref<128x64xf32, #tpu.memory_space<vmem>>, vector<128x64xf32>
    %cst_16 = arith.constant dense<0.000000e+00> : vector<8x64xf32>
    %30 = tpu.matmul %28, %29, %cst_16 {dimension_numbers = #tpu.dot_dimension_numbers<[1], [0], [0], [1], [0, 0, 1, 1], [], []>} : vector<8x128xf32>, vector<128x64xf32>, vector<8x64xf32> -> vector<8x64xf32>
    %c0_17 = arith.constant 0 : index
    %c0_18 = arith.constant 0 : index
    %31 = vector.load %arg6[%c0_17, %c0_18] : memref<1x64xf32, #tpu.memory_space<vmem>>, vector<1x64xf32>
    %c0_19 = arith.constant 0 : index
    %c0_20 = arith.constant 0 : index
    %32 = vector.load %arg7[%c0_19, %c0_20] : memref<1x64xf32, #tpu.memory_space<vmem>>, vector<1x64xf32>
    %cst_21 = arith.constant dense<0.000000e+00> : vector<64xf32>
    %33 = vector.multi_reduction <add>, %30, %cst_21 [0] : vector<8x64xf32> to vector<64xf32>
    %34 = vector.shape_cast %33 : vector<64xf32> to vector<1x64xf32>
    %cst_22 = arith.constant 8.000000e+00 : f32
    %35 = vector.broadcast %cst_22 : f32 to vector<1x64xf32>
    %36 = arith.divf %34, %35 : vector<1x64xf32>
    %37 = vector.broadcast %36 : vector<1x64xf32> to vector<8x64xf32>
    %38 = arith.subf %30, %37 : vector<8x64xf32>
    %39 = arith.mulf %38, %38 : vector<8x64xf32>
    %cst_23 = arith.constant dense<0.000000e+00> : vector<64xf32>
    %40 = vector.multi_reduction <add>, %39, %cst_23 [0] : vector<8x64xf32> to vector<64xf32>
    %41 = vector.shape_cast %40 : vector<64xf32> to vector<1x64xf32>
    %cst_24 = arith.constant 8.000000e+00 : f32
    %42 = vector.broadcast %cst_24 : f32 to vector<1x64xf32>
    %43 = arith.divf %41, %42 : vector<1x64xf32>
    %cst_25 = arith.constant 9.99999974E-6 : f32
    %44 = vector.broadcast %cst_25 : f32 to vector<1x64xf32>
    %45 = arith.addf %43, %44 : vector<1x64xf32>
    %46 = math.rsqrt %45 : vector<1x64xf32>
    %47 = arith.mulf %31, %46 : vector<1x64xf32>
    %48 = arith.mulf %36, %47 : vector<1x64xf32>
    %49 = arith.subf %32, %48 : vector<1x64xf32>
    %50 = vector.broadcast %47 : vector<1x64xf32> to vector<8x64xf32>
    %51 = arith.mulf %30, %50 : vector<8x64xf32>
    %52 = vector.broadcast %49 : vector<1x64xf32> to vector<8x64xf32>
    %53 = arith.addf %51, %52 : vector<8x64xf32>
    %cst_26 = arith.constant 0.000000e+00 : f32
    %54 = vector.broadcast %cst_26 : f32 to vector<8x64xf32>
    %55 = arith.maximumf %53, %54 : vector<8x64xf32>
    %c0_27 = arith.constant 0 : index
    %c0_28 = arith.constant 0 : index
    %56 = vector.load %arg8[%c0_27, %c0_28] : memref<64x32xf32, #tpu.memory_space<vmem>>, vector<64x32xf32>
    %cst_29 = arith.constant dense<0.000000e+00> : vector<8x32xf32>
    %57 = tpu.matmul %55, %56, %cst_29 {dimension_numbers = #tpu.dot_dimension_numbers<[1], [0], [0], [1], [0, 0, 1, 1], [], []>} : vector<8x64xf32>, vector<64x32xf32>, vector<8x32xf32> -> vector<8x32xf32>
    %c0_30 = arith.constant 0 : index
    %c0_31 = arith.constant 0 : index
    %58 = vector.load %arg9[%c0_30, %c0_31] : memref<1x32xf32, #tpu.memory_space<vmem>>, vector<1x32xf32>
    %c0_32 = arith.constant 0 : index
    %c0_33 = arith.constant 0 : index
    %59 = vector.load %arg10[%c0_32, %c0_33] : memref<1x32xf32, #tpu.memory_space<vmem>>, vector<1x32xf32>
    %cst_34 = arith.constant dense<0.000000e+00> : vector<32xf32>
    %60 = vector.multi_reduction <add>, %57, %cst_34 [0] : vector<8x32xf32> to vector<32xf32>
    %61 = vector.shape_cast %60 : vector<32xf32> to vector<1x32xf32>
    %cst_35 = arith.constant 8.000000e+00 : f32
    %62 = vector.broadcast %cst_35 : f32 to vector<1x32xf32>
    %63 = arith.divf %61, %62 : vector<1x32xf32>
    %64 = vector.broadcast %63 : vector<1x32xf32> to vector<8x32xf32>
    %65 = arith.subf %57, %64 : vector<8x32xf32>
    %66 = arith.mulf %65, %65 : vector<8x32xf32>
    %cst_36 = arith.constant dense<0.000000e+00> : vector<32xf32>
    %67 = vector.multi_reduction <add>, %66, %cst_36 [0] : vector<8x32xf32> to vector<32xf32>
    %68 = vector.shape_cast %67 : vector<32xf32> to vector<1x32xf32>
    %cst_37 = arith.constant 8.000000e+00 : f32
    %69 = vector.broadcast %cst_37 : f32 to vector<1x32xf32>
    %70 = arith.divf %68, %69 : vector<1x32xf32>
    %cst_38 = arith.constant 9.99999974E-6 : f32
    %71 = vector.broadcast %cst_38 : f32 to vector<1x32xf32>
    %72 = arith.addf %70, %71 : vector<1x32xf32>
    %73 = math.rsqrt %72 : vector<1x32xf32>
    %74 = arith.mulf %58, %73 : vector<1x32xf32>
    %75 = arith.mulf %63, %74 : vector<1x32xf32>
    %76 = arith.subf %59, %75 : vector<1x32xf32>
    %77 = vector.broadcast %74 : vector<1x32xf32> to vector<8x32xf32>
    %78 = arith.mulf %57, %77 : vector<8x32xf32>
    %79 = vector.broadcast %76 : vector<1x32xf32> to vector<8x32xf32>
    %80 = arith.addf %78, %79 : vector<8x32xf32>
    %cst_39 = arith.constant 0.000000e+00 : f32
    %81 = vector.broadcast %cst_39 : f32 to vector<8x32xf32>
    %82 = arith.maximumf %80, %81 : vector<8x32xf32>
    %c0_40 = arith.constant 0 : index
    %c0_41 = arith.constant 0 : index
    %83 = vector.load %arg11[%c0_40, %c0_41] : memref<32x128xf32, #tpu.memory_space<vmem>>, vector<32x128xf32>
    %cst_42 = arith.constant dense<0.000000e+00> : vector<8x128xf32>
    %84 = tpu.matmul %82, %83, %cst_42 {dimension_numbers = #tpu.dot_dimension_numbers<[1], [0], [0], [1], [0, 0, 1, 1], [], []>} : vector<8x32xf32>, vector<32x128xf32>, vector<8x128xf32> -> vector<8x128xf32>
    %c0_43 = arith.constant 0 : index
    %c0_44 = arith.constant 0 : index
    %85 = vector.load %arg12[%c0_43, %c0_44] : memref<1x128xf32, #tpu.memory_space<vmem>>, vector<1x128xf32>
    %86 = vector.broadcast %85 : vector<1x128xf32> to vector<8x128xf32>
    %87 = arith.addf %84, %86 : vector<8x128xf32>
    %c0_45 = arith.constant 0 : index
    %c0_46 = arith.constant 0 : index
    %c0_47 = arith.constant 0 : index
    %88 = vector.load %arg13[%c0_45, %c0_46, %c0_47] : memref<1x8x128xf32, #tpu.memory_space<vmem>>, vector<1x8x128xf32>
    %89 = vector.shape_cast %88 : vector<1x8x128xf32> to vector<8x128xf32>
    %90 = vector.shape_cast %87 : vector<8x128xf32> to vector<1x8x128xf32>
    tpu.vector_store %arg13[%c0_45, %c0_46, %c0_47], %90 {strides = array<i32>} : memref<1x8x128xf32, #tpu.memory_space<vmem>>, vector<1x8x128xf32>,
    return
  }
  func.func @transform_0(%arg0: i32) -> (i32, i32, i32) {
    %c0_i32 = arith.constant 0 : i32
    %c0_i32_0 = arith.constant 0 : i32
    %c0_i32_1 = arith.constant 0 : i32
    return %arg0, %c0_i32, %c0_i32_0 : i32, i32, i32
  }
  func.func @transform_1(%arg0: i32) -> (i32, i32) {
    %c0_i32 = arith.constant 0 : i32
    %c0_i32_0 = arith.constant 0 : i32
    %c0_i32_1 = arith.constant 0 : i32
    return %c0_i32, %c0_i32_0 : i32, i32
  }
  func.func @transform_2(%arg0: i32) -> (i32, i32) {
    %c0_i32 = arith.constant 0 : i32
    %c0_i32_0 = arith.constant 0 : i32
    %c0_i32_1 = arith.constant 0 : i32
    return %c0_i32, %c0_i32_0 : i32, i32
  }
  func.func @transform_3(%arg0: i32) -> (i32, i32) {
    %c0_i32 = arith.constant 0 : i32
    %c0_i32_0 = arith.constant 0 : i32
    %c0_i32_1 = arith.constant 0 : i32
    return %c0_i32, %c0_i32_0 : i32, i32
  }
  func.func @transform_4(%arg0: i32) -> (i32, i32) {
    %c0_i32 = arith.constant 0 : i32
    %c0_i32_0 = arith.constant 0 : i32
    %c0_i32_1 = arith.constant 0 : i32
    return %c0_i32, %c0_i32_0 : i32, i32
  }
  func.func @transform_5(%arg0: i32) -> (i32, i32) {
    %c0_i32 = arith.constant 0 : i32
    %c0_i32_0 = arith.constant 0 : i32
    %c0_i32_1 = arith.constant 0 : i32
    return %c0_i32, %c0_i32_0 : i32, i32
  }
  func.func @transform_6(%arg0: i32) -> (i32, i32) {
    %c0_i32 = arith.constant 0 : i32
    %c0_i32_0 = arith.constant 0 : i32
    %c0_i32_1 = arith.constant 0 : i32
    return %c0_i32, %c0_i32_0 : i32, i32
  }
  func.func @transform_7(%arg0: i32) -> (i32, i32) {
    %c0_i32 = arith.constant 0 : i32
    %c0_i32_0 = arith.constant 0 : i32
    %c0_i32_1 = arith.constant 0 : i32
    return %c0_i32, %c0_i32_0 : i32, i32
  }
  func.func @transform_8(%arg0: i32) -> (i32, i32) {
    %c0_i32 = arith.constant 0 : i32
    %c0_i32_0 = arith.constant 0 : i32
    %c0_i32_1 = arith.constant 0 : i32
    return %c0_i32, %c0_i32_0 : i32, i32
  }
  func.func @transform_9(%arg0: i32) -> (i32, i32) {
    %c0_i32 = arith.constant 0 : i32
    %c0_i32_0 = arith.constant 0 : i32
    %c0_i32_1 = arith.constant 0 : i32
    return %c0_i32, %c0_i32_0 : i32, i32
  }
  func.func @transform_10(%arg0: i32) -> (i32, i32) {
    %c0_i32 = arith.constant 0 : i32
    %c0_i32_0 = arith.constant 0 : i32
    %c0_i32_1 = arith.constant 0 : i32
    return %c0_i32, %c0_i32_0 : i32, i32
  }
  func.func @transform_11(%arg0: i32) -> (i32, i32) {
    %c0_i32 = arith.constant 0 : i32
    %c0_i32_0 = arith.constant 0 : i32
    %c0_i32_1 = arith.constant 0 : i32
    return %c0_i32, %c0_i32_0 : i32, i32
  }
  func.func @transform_12(%arg0: i32) -> (i32, i32, i32) {
    %c0_i32 = arith.constant 0 : i32
    %c0_i32_0 = arith.constant 0 : i32
    %c0_i32_1 = arith.constant 0 : i32
    return %arg0, %c0_i32, %c0_i32_0 : i32, i32, i32
  }
}

</mosaic_0001>

<llo_original>
// kernel: tpu_custom_call.1
$region0: #{tpu_custom_call.1}
  #allocation0 [shape = 'u32[]', space=smem, size = 0x4, offset = 0x4, fixed_abs, tag = 'smem constant byte address 0x4 - core index']
  #allocation1 [shape = 'u32[144,128]{1,0:T(1,128)}', space=vmem, size = 0x12000, scoped, tag = 'internal scratch']
  %s0 = inlined_call_operand.vmem [shape: f32[1,8,128], index: 0, kind: input, shape index: {}]
  %s1 = inlined_call_operand.vmem [shape: f32[128,128], index: 1, kind: input, shape index: {}]
  %s2 = inlined_call_operand.vmem [shape: f32[1,128], index: 2, kind: input, shape index: {}]
  %s3 = inlined_call_operand.vmem [shape: f32[1,128], index: 3, kind: input, shape index: {}]
  %s4 = inlined_call_operand.vmem [shape: f32[128,64], index: 4, kind: input, shape index: {}]
  %s5 = inlined_call_operand.vmem [shape: f32[1,64], index: 5, kind: input, shape index: {}]
  %s6 = inlined_call_operand.vmem [shape: f32[1,64], index: 6, kind: input, shape index: {}]
  %s7 = inlined_call_operand.vmem [shape: f32[64,32], index: 7, kind: input, shape index: {}]
  %s8 = inlined_call_operand.vmem [shape: f32[1,32], index: 8, kind: input, shape index: {}]
  %s9 = inlined_call_operand.vmem [shape: f32[1,32], index: 9, kind: input, shape index: {}]
  %s10 = inlined_call_operand.vmem [shape: f32[32,128], index: 10, kind: input, shape index: {}]
  %s11 = inlined_call_operand.vmem [shape: f32[1,128], index: 11, kind: input, shape index: {}]
  %s12 = inlined_call_operand.hbm [shape: f32[1,8,128], index: 12, kind: output, shape index: {}]
  %s13 = sld [smem:[#allocation0]]
  $region58: #{tpu_custom_call.1} parent=0
    _
  %s15 = ssub.s32 1, %s13
  %s16 = scalar_select 0, %s15, %s13
  $region1: #{tpu_custom_call.1} parent=0
    #allocation2 [shape = 'u8[4096]{0}', space=vmem, size = 0x1000, scoped, tag = 'output window, operand 0, single buffered']
    #allocation3 [shape = 's32[1]{0}', space=sflag, size = 0x4, scoped, tag = 'scoped memory for tpu_custom_call.1']
    %17 = vsyncpa [#allocation3], 0
    // Predicated region
    $region2: #{tpu_custom_call.1} parent=1 // pred_check
      _
    $region3: #{tpu_custom_call.1} parent=1 // pred_check_branch
      %19 = sbr.rel (0) target = $region5
    $region4: #{tpu_custom_call.1} parent=1 // pred_region
      _
    $region5: #{tpu_custom_call.1} parent=1 // pred_fallthru
      _
    // Predicated region
    $region6: #{tpu_custom_call.1} parent=1 // pred_check
      _
    $region7: #{tpu_custom_call.1} parent=1 // pred_check_branch
      %21 = sbr.rel (0) target = $region9
    $region8: #{tpu_custom_call.1} parent=1 // pred_region
      _
    $region9: #{tpu_custom_call.1} parent=1 // pred_fallthru
      _
    // Predicated region
    $region10: #{tpu_custom_call.1} parent=1 // pred_check
      _
    $region11: #{tpu_custom_call.1} parent=1 // pred_check_branch
      %23 = sbr.rel (0) target = $region13
    $region12: #{tpu_custom_call.1} parent=1 // pred_region
      _
    $region13: #{tpu_custom_call.1} parent=1 // pred_fallthru
      _
    // Predicated region
    $region14: #{tpu_custom_call.1} parent=1 // pred_check
      _
    $region15: #{tpu_custom_call.1} parent=1 // pred_check_branch
      %25 = sbr.rel (0) target = $region17
    $region16: #{tpu_custom_call.1} parent=1 // pred_region
      _
    $region17: #{tpu_custom_call.1} parent=1 // pred_fallthru
      _
    // Predicated region
    $region18: #{tpu_custom_call.1} parent=1 // pred_check
      _
    $region19: #{tpu_custom_call.1} parent=1 // pred_check_branch
      %27 = sbr.rel (0) target = $region21
    $region20: #{tpu_custom_call.1} parent=1 // pred_region
      _
    $region21: #{tpu_custom_call.1} parent=1 // pred_fallthru
      _
    // Predicated region
    $region22: #{tpu_custom_call.1} parent=1 // pred_check
      _
    $region23: #{tpu_custom_call.1} parent=1 // pred_check_branch
      %29 = sbr.rel (0) target = $region25
    $region24: #{tpu_custom_call.1} parent=1 // pred_region
      _
    $region25: #{tpu_custom_call.1} parent=1 // pred_fallthru
      _
    // Predicated region
    $region26: #{tpu_custom_call.1} parent=1 // pred_check
      _
    $region27: #{tpu_custom_call.1} parent=1 // pred_check_branch
      %31 = sbr.rel (0) target = $region29
    $region28: #{tpu_custom_call.1} parent=1 // pred_region
      _
    $region29: #{tpu_custom_call.1} parent=1 // pred_fallthru
      _
    // Predicated region
    $region30: #{tpu_custom_call.1} parent=1 // pred_check
      _
    $region31: #{tpu_custom_call.1} parent=1 // pred_check_branch
      %33 = sbr.rel (0) target = $region33
    $region32: #{tpu_custom_call.1} parent=1 // pred_region
      _
    $region33: #{tpu_custom_call.1} parent=1 // pred_fallthru
      _
    // Predicated region
    $region34: #{tpu_custom_call.1} parent=1 // pred_check
      _
    $region35: #{tpu_custom_call.1} parent=1 // pred_check_branch
      %35 = sbr.rel (0) target = $region37
    $region36: #{tpu_custom_call.1} parent=1 // pred_region
      _
    $region37: #{tpu_custom_call.1} parent=1 // pred_fallthru
      _
    // Predicated region
    $region38: #{tpu_custom_call.1} parent=1 // pred_check
      _
    $region39: #{tpu_custom_call.1} parent=1 // pred_check_branch
      %37 = sbr.rel (0) target = $region41
    $region40: #{tpu_custom_call.1} parent=1 // pred_region
      _
    $region41: #{tpu_custom_call.1} parent=1 // pred_fallthru
      _
    // Predicated region
    $region42: #{tpu_custom_call.1} parent=1 // pred_check
      _
    $region43: #{tpu_custom_call.1} parent=1 // pred_check_branch
      %39 = sbr.rel (0) target = $region45
    $region44: #{tpu_custom_call.1} parent=1 // pred_region
      _
    $region45: #{tpu_custom_call.1} parent=1 // pred_fallthru
      _
    // Predicated region
    $region46: #{tpu_custom_call.1} parent=1 // pred_check
      _
    $region47: #{tpu_custom_call.1} parent=1 // pred_check_branch
      %41 = sbr.rel (0) target = $region49
    $region48: #{tpu_custom_call.1} parent=1 // pred_region
      _
    $region49: #{tpu_custom_call.1} parent=1 // pred_fallthru
      _
    %v42 = vld [vmem:[%s0] sm:$0xff]
    %v43 = vld [vmem:[%s1] sm:$0xff]
    %v44 = vld [vmem:[%s1 + $0x8] sm:$0xff]
    %v45 = vld [vmem:[%s1 + $0x10] sm:$0xff]
    %v46 = vld [vmem:[%s1 + $0x18] sm:$0xff]
    %v47 = vld [vmem:[%s1 + $0x20] sm:$0xff]
    %v48 = vld [vmem:[%s1 + $0x28] sm:$0xff]
    %v49 = vld [vmem:[%s1 + $0x30] sm:$0xff]
    %v50 = vld [vmem:[%s1 + $0x38] sm:$0xff]
    %v51 = vld [vmem:[%s1 + $0x40] sm:$0xff]
    %v52 = vld [vmem:[%s1 + $0x48] sm:$0xff]
    %v53 = vld [vmem:[%s1 + $0x50] sm:$0xff]
    %v54 = vld [vmem:[%s1 + $0x58] sm:$0xff]
    %v55 = vld [vmem:[%s1 + $0x60] sm:$0xff]
    %v56 = vld [vmem:[%s1 + $0x68] sm:$0xff]
    %v57 = vld [vmem:[%s1 + $0x70] sm:$0xff]
    %v58 = vld [vmem:[%s1 + $0x78] sm:$0xff]
    %59 = vmatprep.subr.mxu0 0.0
    %60 = vmatpush1.msra.mxu0 %v43
    %61 = vmatprep.subr.mxu0 0.0
    %62 = vmatpush1.msra.mxu0 %v44
    %63 = vmatprep.subr.mxu0 0.0
    %64 = vmatpush1.msra.mxu0 %v45
    %65 = vmatprep.subr.mxu0 0.0
    %66 = vmatpush1.msra.mxu0 %v46
    %67 = vmatprep.subr.mxu0 0.0
    %68 = vmatpush1.msra.mxu0 %v47
    %69 = vmatprep.subr.mxu0 0.0
    %70 = vmatpush1.msra.mxu0 %v48
    %71 = vmatprep.subr.mxu0 0.0
    %72 = vmatpush1.msra.mxu0 %v49
    %73 = vmatprep.subr.mxu0 0.0
    %74 = vmatpush1.msra.mxu0 %v50
    %75 = vmatprep.subr.mxu0 0.0
    %76 = vmatpush1.msra.mxu0 %v51
    %77 = vmatprep.subr.mxu0 0.0
    %78 = vmatpush1.msra.mxu0 %v52
    %79 = vmatprep.subr.mxu0 0.0
    %80 = vmatpush1.msra.mxu0 %v53
    %81 = vmatprep.subr.mxu0 0.0
    %82 = vmatpush1.msra.mxu0 %v54
    %83 = vmatprep.subr.mxu0 0.0
    %84 = vmatpush1.msra.mxu0 %v55
    %85 = vmatprep.subr.mxu0 0.0
    %86 = vmatpush1.msra.mxu0 %v56
    %87 = vmatprep.subr.mxu0 0.0
    %88 = vmatpush1.msra.mxu0 %v57
    %89 = vmatprep.subr.mxu0 0.0
    %90 = vmatpush1.msra.mxu0 %v58
    %91 = vmatprep.subr.mxu0 0.0
    %92 = vmatpush1.msra.mxu0 0.0
    %93 = vmatprep.subr.mxu0 0.0
    %94 = vmatpush1.msra.mxu0 0.0
    %95 = vmatprep.subr.mxu0 0.0
    %96 = vmatpush1.msra.mxu0 0.0
    %97 = vmatprep.subr.mxu0 0.0
    %98 = vmatpush1.msra.mxu0 0.0
    %99 = vmatprep.subr.mxu0 0.0
    %100 = vmatpush1.msra.mxu0 0.0
    %101 = vmatprep.subr.mxu0 0.0
    %102 = vmatpush1.msra.mxu0 0.0
    %103 = vmatprep.subr.mxu0 0.0
    %104 = vmatpush1.msra.mxu0 0.0
    %105 = vmatprep.subr.mxu0 0.0
    %106 = vmatpush1.msra.mxu0 0.0
    %107 = vmatprep.subr.mxu0 0.0
    %108 = vmatpush1.msra.mxu0 0.0
    %109 = vmatprep.subr.mxu0 0.0
    %110 = vmatpush1.msra.mxu0 0.0
    %111 = vmatprep.subr.mxu0 0.0
    %112 = vmatpush1.msra.mxu0 0.0
    %113 = vmatprep.subr.mxu0 0.0
    %114 = vmatpush1.msra.mxu0 0.0
    %115 = vmatprep.subr.mxu0 0.0
    %116 = vmatpush1.msra.mxu0 0.0
    %117 = vmatprep.subr.mxu0 0.0
    %118 = vmatpush1.msra.mxu0 0.0
    %119 = vmatprep.subr.mxu0 0.0
    %120 = vmatpush1.msra.mxu0 0.0
    %121 = vmatprep.subr.mxu0 0.0
    %122 = vmatpush1.msra.mxu0 0.0
    %123 = vmatprep.mubr.f32.mxu0 0.0
    %124 = vmatmul.mubr.f32.gmra.mrb[0].mxu0 %v42
    %v125 = vpop.f32.mrb[0].mxu0
    %v126 = vadd.f32 0.0, %v125
    %v127 = vpop.f32.mrb[0].mxu0
    %128 = vdwg.mxu0
    %v129 = vld [vmem:[%s2] sm:$0x1]
    %v130 = vld [vmem:[%s3] sm:$0x1]
    %v131 = vrot.slane %v126, 4
    %v132 = vadd.f32 %v126, %v131
    %v133 = vrot.slane %v132, 2
    %v134 = vadd.f32 %v132, %v133
    %v135 = vrot.slane %v134, 1
    %v136 = vadd.f32 %v134, %v135
    %v137 = vrcp.pop 8.0
    %v138 = vmul.f32 %v136, %v137
    %v139 = vsub.f32 %v126, %v138
    %v140 = vmul.f32 %v139, %v139
    %v141 = vrot.slane %v140, 4
    %v142 = vadd.f32 %v140, %v141
    %v143 = vrot.slane %v142, 2
    %v144 = vadd.f32 %v142, %v143
    %v145 = vrot.slane %v144, 1
    %v146 = vadd.f32 %v144, %v145
    %v147 = vmul.f32 %v146, %v137
    %v148 = vadd.f32 %v147, 1e-05
    %v149 = vrsqrt.pop %v148
    %v150 = vmul.f32 %v129, %v149
    %v151 = vmul.f32 %v138, %v150
    %v152 = vsub.f32 %v130, %v151
    %v154 = vlaneseq
    %v155 = vshrl.u32 %v154, 7
    %v156 = vsub.s32 0, %v155
    %v157 = vrot.slane %v150, %v156
    %v159 = vmul.f32 %v126, %v157
    %v161 = vlaneseq
    %v162 = vshrl.u32 %v161, 7
    %v163 = vsub.s32 0, %v162
    %v164 = vrot.slane %v152, %v163
    %v166 = vadd.f32 %v159, %v164
    %v167 = vmax.f32 %v166, 0.0
    %v168 = vld [vmem:[%s4] sm:$0xff]
    %v169 = vld [vmem:[%s4 + $0x8] sm:$0xff]
    %v170 = vld [vmem:[%s4 + $0x10] sm:$0xff]
    %v171 = vld [vmem:[%s4 + $0x18] sm:$0xff]
    %v172 = vld [vmem:[%s4 + $0x20] sm:$0xff]
    %v173 = vld [vmem:[%s4 + $0x28] sm:$0xff]
    %v174 = vld [vmem:[%s4 + $0x30] sm:$0xff]
    %v175 = vld [vmem:[%s4 + $0x38] sm:$0xff]
    %v176 = vld [vmem:[%s4 + $0x40] sm:$0xff]
    %v177 = vld [vmem:[%s4 + $0x48] sm:$0xff]
    %v178 = vld [vmem:[%s4 + $0x50] sm:$0xff]
    %v179 = vld [vmem:[%s4 + $0x58] sm:$0xff]
    %v180 = vld [vmem:[%s4 + $0x60] sm:$0xff]
    %v181 = vld [vmem:[%s4 + $0x68] sm:$0xff]
    %v182 = vld [vmem:[%s4 + $0x70] sm:$0xff]
    %v183 = vld [vmem:[%s4 + $0x78] sm:$0xff]
    %184 = vmatprep.subr.mxu0 0.0
    %185 = vmatpush1.msra.mxu0 %v168
    %186 = vmatprep.subr.mxu0 0.0
    %187 = vmatpush1.msra.mxu0 %v169
    %188 = vmatprep.subr.mxu0 0.0
    %189 = vmatpush1.msra.mxu0 %v170
    %190 = vmatprep.subr.mxu0 0.0
    %191 = vmatpush1.msra.mxu0 %v171
    %192 = vmatprep.subr.mxu0 0.0
    %193 = vmatpush1.msra.mxu0 %v172
    %194 = vmatprep.subr.mxu0 0.0
    %195 = vmatpush1.msra.mxu0 %v173
    %196 = vmatprep.subr.mxu0 0.0
    %197 = vmatpush1.msra.mxu0 %v174
    %198 = vmatprep.subr.mxu0 0.0
    %199 = vmatpush1.msra.mxu0 %v175
    %200 = vmatprep.subr.mxu0 0.0
    %201 = vmatpush1.msra.mxu0 %v176
    %202 = vmatprep.subr.mxu0 0.0
    %203 = vmatpush1.msra.mxu0 %v177
    %204 = vmatprep.subr.mxu0 0.0
    %205 = vmatpush1.msra.mxu0 %v178
    %206 = vmatprep.subr.mxu0 0.0
    %207 = vmatpush1.msra.mxu0 %v179
    %208 = vmatprep.subr.mxu0 0.0
    %209 = vmatpush1.msra.mxu0 %v180
    %210 = vmatprep.subr.mxu0 0.0
    %211 = vmatpush1.msra.mxu0 %v181
    %212 = vmatprep.subr.mxu0 0.0
    %213 = vmatpush1.msra.mxu0 %v182
    %214 = vmatprep.subr.mxu0 0.0
    %215 = vmatpush1.msra.mxu0 %v183
    %216 = vmatprep.subr.mxu0 0.0
    %217 = vmatpush1.msra.mxu0 0.0
    %218 = vmatprep.subr.mxu0 0.0
    %219 = vmatpush1.msra.mxu0 0.0
    %220 = vmatprep.subr.mxu0 0.0
    %221 = vmatpush1.msra.mxu0 0.0
    %222 = vmatprep.subr.mxu0 0.0
    %223 = vmatpush1.msra.mxu0 0.0
    %224 = vmatprep.subr.mxu0 0.0
    %225 = vmatpush1.msra.mxu0 0.0
    %226 = vmatprep.subr.mxu0 0.0
    %227 = vmatpush1.msra.mxu0 0.0
    %228 = vmatprep.subr.mxu0 0.0
    %229 = vmatpush1.msra.mxu0 0.0
    %230 = vmatprep.subr.mxu0 0.0
    %231 = vmatpush1.msra.mxu0 0.0
    %232 = vmatprep.subr.mxu0 0.0
    %233 = vmatpush1.msra.mxu0 0.0
    %234 = vmatprep.subr.mxu0 0.0
    %235 = vmatpush1.msra.mxu0 0.0
    %236 = vmatprep.subr.mxu0 0.0
    %237 = vmatpush1.msra.mxu0 0.0
    %238 = vmatprep.subr.mxu0 0.0
    %239 = vmatpush1.msra.mxu0 0.0
    %240 = vmatprep.subr.mxu0 0.0
    %241 = vmatpush1.msra.mxu0 0.0
    %242 = vmatprep.subr.mxu0 0.0
    %243 = vmatpush1.msra.mxu0 0.0
    %244 = vmatprep.subr.mxu0 0.0
    %245 = vmatpush1.msra.mxu0 0.0
    %246 = vmatprep.subr.mxu0 0.0
    %247 = vmatpush1.msra.mxu0 0.0
    %248 = vmatprep.mubr.f32.mxu0 0.0
    %249 = vmatmul.mubr.f32.gmra.mrb[0].mxu0 %v167
    %v250 = vpop.f32.mrb[0].mxu0
    %v251 = vadd.f32 0.0, %v250
    %v252 = vpop.f32.mrb[0].mxu0
    %253 = vdwg.mxu0
    %v254 = vld [vmem:[%s5] sm:$0x1]
    %v255 = vld [vmem:[%s6] sm:$0x1]
    %vm256 = vcmask 523264
    %v257 = vsel %vm256, %v251, 0.0
    %v258 = vrot.slane %v257, 4
    %v259 = vadd.f32 %v257, %v258
    %v260 = vrot.slane %v259, 2
    %v261 = vadd.f32 %v259, %v260
    %v262 = vrot.slane %v261, 1
    %v263 = vadd.f32 %v261, %v262
    %v264 = vmul.f32 %v263, %v137
    %v265 = vsub.f32 %v251, %v264
    %v266 = vmul.f32 %v265, %v265
    %v267 = vsel %vm256, %v266, 0.0
    %v268 = vrot.slane %v267, 4
    %v269 = vadd.f32 %v267, %v268
    %v270 = vrot.slane %v269, 2
    %v271 = vadd.f32 %v269, %v270
    %v272 = vrot.slane %v271, 1
    %v273 = vadd.f32 %v271, %v272
    %v274 = vmul.f32 %v273, %v137
    %v275 = vadd.f32 %v274, 1e-05
    %v276 = vrsqrt.pop %v275
    %v277 = vmul.f32 %v254, %v276
    %v278 = vmul.f32 %v264, %v277
    %v279 = vsub.f32 %v255, %v278
    %v281 = vlaneseq
    %v282 = vshrl.u32 %v281, 7
    %v283 = vsub.s32 0, %v282
    %v284 = vrot.slane %v277, %v283
    %v286 = vmul.f32 %v251, %v284
    %v288 = vlaneseq
    %v289 = vshrl.u32 %v288, 7
    %v290 = vsub.s32 0, %v289
    %v291 = vrot.slane %v279, %v290
    %v293 = vadd.f32 %v286, %v291
    %v294 = vmax.f32 %v293, 0.0
    %v295 = vld [vmem:[%s7] sm:$0xff]
    %v296 = vld [vmem:[%s7 + $0x8] sm:$0xff]
    %v297 = vld [vmem:[%s7 + $0x10] sm:$0xff]
    %v298 = vld [vmem:[%s7 + $0x18] sm:$0xff]
    %v299 = vld [vmem:[%s7 + $0x20] sm:$0xff]
    %v300 = vld [vmem:[%s7 + $0x28] sm:$0xff]
    %v301 = vld [vmem:[%s7 + $0x30] sm:$0xff]
    %v302 = vld [vmem:[%s7 + $0x38] sm:$0xff]
    %v304 = vsel %vm256, %v294, 0
    %306 = vmatprep.subr.mxu0 0.0
    %307 = vmatpush1.msra.mxu0 %v295
    %308 = vmatprep.subr.mxu0 0.0
    %309 = vmatpush1.msra.mxu0 %v296
    %310 = vmatprep.subr.mxu0 0.0
    %311 = vmatpush1.msra.mxu0 %v297
    %312 = vmatprep.subr.mxu0 0.0
    %313 = vmatpush1.msra.mxu0 %v298
    %314 = vmatprep.subr.mxu0 0.0
    %315 = vmatpush1.msra.mxu0 %v299
    %316 = vmatprep.subr.mxu0 0.0
    %317 = vmatpush1.msra.mxu0 %v300
    %318 = vmatprep.subr.mxu0 0.0
    %319 = vmatpush1.msra.mxu0 %v301
    %320 = vmatprep.subr.mxu0 0.0
    %321 = vmatpush1.msra.mxu0 %v302
    %322 = vmatprep.subr.mxu0 0.0
    %323 = vmatpush1.msra.mxu0 0.0
    %324 = vmatprep.subr.mxu0 0.0
    %325 = vmatpush1.msra.mxu0 0.0
    %326 = vmatprep.subr.mxu0 0.0
    %327 = vmatpush1.msra.mxu0 0.0
    %328 = vmatprep.subr.mxu0 0.0
    %329 = vmatpush1.msra.mxu0 0.0
    %330 = vmatprep.subr.mxu0 0.0
    %331 = vmatpush1.msra.mxu0 0.0
    %332 = vmatprep.subr.mxu0 0.0
    %333 = vmatpush1.msra.mxu0 0.0
    %334 = vmatprep.subr.mxu0 0.0
    %335 = vmatpush1.msra.mxu0 0.0
    %336 = vmatprep.subr.mxu0 0.0
    %337 = vmatpush1.msra.mxu0 0.0
    %338 = vmatprep.subr.mxu0 0.0
    %339 = vmatpush1.msra.mxu0 0.0
    %340 = vmatprep.subr.mxu0 0.0
    %341 = vmatpush1.msra.mxu0 0.0
    %342 = vmatprep.subr.mxu0 0.0
    %343 = vmatpush1.msra.mxu0 0.0
    %344 = vmatprep.subr.mxu0 0.0
    %345 = vmatpush1.msra.mxu0 0.0
    %346 = vmatprep.subr.mxu0 0.0
    %347 = vmatpush1.msra.mxu0 0.0
    %348 = vmatprep.subr.mxu0 0.0
    %349 = vmatpush1.msra.mxu0 0.0
    %350 = vmatprep.subr.mxu0 0.0
    %351 = vmatpush1.msra.mxu0 0.0
    %352 = vmatprep.subr.mxu0 0.0
    %353 = vmatpush1.msra.mxu0 0.0
    %354 = vmatprep.subr.mxu0 0.0
    %355 = vmatpush1.msra.mxu0 0.0
    %356 = vmatprep.subr.mxu0 0.0
    %357 = vmatpush1.msra.mxu0 0.0
    %358 = vmatprep.subr.mxu0 0.0
    %359 = vmatpush1.msra.mxu0 0.0
    %360 = vmatprep.subr.mxu0 0.0
    %361 = vmatpush1.msra.mxu0 0.0
    %362 = vmatprep.subr.mxu0 0.0
    %363 = vmatpush1.msra.mxu0 0.0
    %364 = vmatprep.subr.mxu0 0.0
    %365 = vmatpush1.msra.mxu0 0.0
    %366 = vmatprep.subr.mxu0 0.0
    %367 = vmatpush1.msra.mxu0 0.0
    %368 = vmatprep.subr.mxu0 0.0
    %369 = vmatpush1.msra.mxu0 0.0
    %370 = vmatprep.mubr.f32.mxu0 0.0
    %371 = vmatmul.mubr.f32.gmra.mrb[0].mxu0 %v304
    %v372 = vpop.f32.mrb[0].mxu0
    %v373 = vadd.f32 0.0, %v372
    %v374 = vpop.f32.mrb[0].mxu0
    %375 = vdwg.mxu0
    %v376 = vld [vmem:[%s8] sm:$0x1]
    %v377 = vld [vmem:[%s9] sm:$0x1]
    %vm378 = vcmask 261120
    %v379 = vsel %vm378, %v373, 0.0
    %v380 = vrot.slane %v379, 4
    %v381 = vadd.f32 %v379, %v380
    %v382 = vrot.slane %v381, 2
    %v383 = vadd.f32 %v381, %v382
    %v384 = vrot.slane %v383, 1
    %v385 = vadd.f32 %v383, %v384
    %v386 = vmul.f32 %v385, %v137
    %v387 = vsub.f32 %v373, %v386
    %v388 = vmul.f32 %v387, %v387
    %v389 = vsel %vm378, %v388, 0.0
    %v390 = vrot.slane %v389, 4
    %v391 = vadd.f32 %v389, %v390
    %v392 = vrot.slane %v391, 2
    %v393 = vadd.f32 %v391, %v392
    %v394 = vrot.slane %v393, 1
    %v395 = vadd.f32 %v393, %v394
    %v396 = vmul.f32 %v395, %v137
    %v397 = vadd.f32 %v396, 1e-05
    %v398 = vrsqrt.pop %v397
    %v399 = vmul.f32 %v376, %v398
    %v400 = vmul.f32 %v386, %v399
    %v401 = vsub.f32 %v377, %v400
    %v403 = vlaneseq
    %v404 = vshrl.u32 %v403, 7
    %v405 = vsub.s32 0, %v404
    %v406 = vrot.slane %v399, %v405
    %v408 = vmul.f32 %v373, %v406
    %v410 = vlaneseq
    %v411 = vshrl.u32 %v410, 7
    %v412 = vsub.s32 0, %v411
    %v413 = vrot.slane %v401, %v412
    %v415 = vadd.f32 %v408, %v413
    %v416 = vmax.f32 %v415, 0.0
    %v417 = vld [vmem:[%s10] sm:$0xff]
    %v418 = vld [vmem:[%s10 + $0x8] sm:$0xff]
    %v419 = vld [vmem:[%s10 + $0x10] sm:$0xff]
    %v420 = vld [vmem:[%s10 + $0x18] sm:$0xff]
    %v421 = vld [vmem:[%s11] sm:$0x1]
    %v423 = vlaneseq
    %v424 = vshrl.u32 %v423, 7
    %v425 = vsub.s32 0, %v424
    %v426 = vrot.slane %v421, %v425
    %v429 = vsel %vm378, %v416, 0
    %431 = vmatprep.subr.mxu0 0.0
    %432 = vmatpush1.msra.mxu0 %v417
    %433 = vmatprep.subr.mxu0 0.0
    %434 = vmatpush1.msra.mxu0 %v418
    %435 = vmatprep.subr.mxu0 0.0
    %436 = vmatpush1.msra.mxu0 %v419
    %437 = vmatprep.subr.mxu0 0.0
    %438 = vmatpush1.msra.mxu0 %v420
    %439 = vmatprep.subr.mxu0 0.0
    %440 = vmatpush1.msra.mxu0 0.0
    %441 = vmatprep.subr.mxu0 0.0
    %442 = vmatpush1.msra.mxu0 0.0
    %443 = vmatprep.subr.mxu0 0.0
    %444 = vmatpush1.msra.mxu0 0.0
    %445 = vmatprep.subr.mxu0 0.0
    %446 = vmatpush1.msra.mxu0 0.0
    %447 = vmatprep.subr.mxu0 0.0
    %448 = vmatpush1.msra.mxu0 0.0
    %449 = vmatprep.subr.mxu0 0.0
    %450 = vmatpush1.msra.mxu0 0.0
    %451 = vmatprep.subr.mxu0 0.0
    %452 = vmatpush1.msra.mxu0 0.0
    %453 = vmatprep.subr.mxu0 0.0
    %454 = vmatpush1.msra.mxu0 0.0
    %455 = vmatprep.subr.mxu0 0.0
    %456 = vmatpush1.msra.mxu0 0.0
    %457 = vmatprep.subr.mxu0 0.0
    %458 = vmatpush1.msra.mxu0 0.0
    %459 = vmatprep.subr.mxu0 0.0
    %460 = vmatpush1.msra.mxu0 0.0
    %461 = vmatprep.subr.mxu0 0.0
    %462 = vmatpush1.msra.mxu0 0.0
    %463 = vmatprep.subr.mxu0 0.0
    %464 = vmatpush1.msra.mxu0 0.0
    %465 = vmatprep.subr.mxu0 0.0
    %466 = vmatpush1.msra.mxu0 0.0
    %467 = vmatprep.subr.mxu0 0.0
    %468 = vmatpush1.msra.mxu0 0.0
    %469 = vmatprep.subr.mxu0 0.0
    %470 = vmatpush1.msra.mxu0 0.0
    %471 = vmatprep.subr.mxu0 0.0
    %472 = vmatpush1.msra.mxu0 0.0
    %473 = vmatprep.subr.mxu0 0.0
    %474 = vmatpush1.msra.mxu0 0.0
    %475 = vmatprep.subr.mxu0 0.0
    %476 = vmatpush1.msra.mxu0 0.0
    %477 = vmatprep.subr.mxu0 0.0
    %478 = vmatpush1.msra.mxu0 0.0
    %479 = vmatprep.subr.mxu0 0.0
    %480 = vmatpush1.msra.mxu0 0.0
    %481 = vmatprep.subr.mxu0 0.0
    %482 = vmatpush1.msra.mxu0 0.0
    %483 = vmatprep.subr.mxu0 0.0
    %484 = vmatpush1.msra.mxu0 0.0
    %485 = vmatprep.subr.mxu0 0.0
    %486 = vmatpush1.msra.mxu0 0.0
    %487 = vmatprep.subr.mxu0 0.0
    %488 = vmatpush1.msra.mxu0 0.0
    %489 = vmatprep.subr.mxu0 0.0
    %490 = vmatpush1.msra.mxu0 0.0
    %491 = vmatprep.subr.mxu0 0.0
    %492 = vmatpush1.msra.mxu0 0.0
    %493 = vmatprep.subr.mxu0 0.0
    %494 = vmatpush1.msra.mxu0 0.0
    %495 = vmatprep.mubr.f32.mxu0 0.0
    %496 = vmatmul.mubr.f32.gmra.mrb[0].mxu0 %v429
    %v497 = vpop.f32.mrb[0].mxu0
    %v498 = vadd.f32 %v426, %v497
    %v499 = vpop.f32.mrb[0].mxu0
    %500 = vdwg.mxu0
    %501 = vst [vmem:[#allocation2] sm:$0xff] %v498
    // Predicated region
    $region50: #{tpu_custom_call.1} parent=1 // pred_check
      _
    $region51: #{tpu_custom_call.1} parent=1 // pred_check_branch
      %503 = sbr.rel (0) target = $region53
    $region52: #{tpu_custom_call.1} parent=1 // pred_region
      %s505 = ssub.s32 128, 128
      %506 = vsyncadd [#allocation3], %s505
      %s508 = sshll.u32 [#allocation2], 4
      %s509 = int_to_ptr.vmem [resolvable:$true] %s508
      %511 = dma.vmem_to_hbm [thread:$0]  %s509, 128, %s12, [#allocation3]
    $region53: #{tpu_custom_call.1} parent=1 // pred_fallthru
      _
    // Predicated region
    $region54: #{tpu_custom_call.1} parent=1 // pred_check
      _
    $region55: #{tpu_custom_call.1} parent=1 // pred_check_branch
      %513 = sbr.rel (0) target = $region57
    $region56: #{tpu_custom_call.1} parent=1 // pred_region
      %514 = dma.done [#allocation3], 128
    $region57: #{tpu_custom_call.1} parent=1 // pred_fallthru
      _
    %515 = vsyncpa [#allocation3], 1

</llo_original>
